<compile_context>
chip_gen: v7x
topology: tpu7x:2x2x1
jax: 0.10.0
libtpu: 0.0.40
codegen_flags: <defaults>
</compile_context>

<pallas_src>
import functools

import jax
import jax.numpy as jnp
from jax.experimental import pallas as pl
from jax.experimental.pallas import tpu as pltpu

IN_EPS = 1e-5
TM_MAX = 256   # M-tile cap; matches the 2x256x256 MXU on v6e/v7x, fine on v5e too


# ---------------------------------------------------------------------------
# Pallas kernel 1: matmul with fused bias + activation epilogue
#   a: (tm, K) bf16   b: (K, N) bf16   bias: (1, N) f32   o: (tm, N) f32
# ---------------------------------------------------------------------------
def matmul_bias_act_kernel(a_ref, b_ref, bias_ref, o_ref, *, act):
    y = jnp.dot(a_ref[...], b_ref[...], preferred_element_type=jnp.float32)
    y = y + bias_ref[...]
    if act == "relu":
        y = jnp.maximum(y, 0.0)
    elif act == "tanh":
        y = jnp.tanh(y)
    o_ref[...] = y


def pallas_matmul_bias_act(a, b, bias, *, act=None):
    """a: (M, K) bf16, b: (K, N) bf16, bias: (N,) f32 -> (M, N) f32."""
    M, K = a.shape
    K2, N = b.shape
    assert K == K2
    # Full-K / full-N blocks: no reduction grid axis, no accumulator scratch,
    # no explicit zero padding or output slicing. M is tiled; the boundary
    # block is masked by Pallas so M need not be a multiple of the tile.
    tm = M if M <= TM_MAX else TM_MAX
    grid = (pl.cdiv(M, tm),)
    bias2 = bias.reshape(1, N).astype(jnp.float32)
    kernel = functools.partial(matmul_bias_act_kernel, act=act)
    return pl.pallas_call(
        kernel,
        out_shape=jax.ShapeDtypeStruct((M, N), jnp.float32),
        grid_spec=pltpu.PrefetchScalarGridSpec(
            num_scalar_prefetch=0,
            grid=grid,
            in_specs=[
                pl.BlockSpec((tm, K), lambda i: (i, 0)),
                pl.BlockSpec((K, N), lambda i: (0, 0)),
                pl.BlockSpec((1, N), lambda i: (0, 0)),
            ],
            out_specs=pl.BlockSpec((tm, N), lambda i: (i, 0)),
        ),
        compiler_params=pltpu.CompilerParams(dimension_semantics=("parallel",)),
    )(a, b, bias2)


# ---------------------------------------------------------------------------
# Pallas kernel 2: InstanceNorm2d (affine=False, eps=1e-5) + optional ReLU,
#                  optionally fused with the ResnetBlock residual add.
# ---------------------------------------------------------------------------
def instnorm_kernel(x_ref, o_ref, *, eps, relu):
    x = x_ref[...]                                                # (1, HW, C)
    mean = jnp.mean(x, axis=1, keepdims=True)
    var = jnp.mean(jnp.square(x - mean), axis=1, keepdims=True)   # biased, as torch
    y = (x - mean) * jax.lax.rsqrt(var + eps)
    if relu:
        y = jnp.maximum(y, 0.0)
    o_ref[...] = y


def instnorm_residual_kernel(x_ref, r_ref, o_ref, *, eps):
    x = x_ref[...]
    mean = jnp.mean(x, axis=1, keepdims=True)
    var = jnp.mean(jnp.square(x - mean), axis=1, keepdims=True)
    y = (x - mean) * jax.lax.rsqrt(var + eps)
    o_ref[...] = r_ref[...] + y                                   # fused residual add


def pallas_instnorm(x_nhwc, *, residual=None, relu=False, eps=IN_EPS):
    N, H, W, C = x_nhwc.shape
    HW = H * W
    x3 = x_nhwc.reshape(N, HW, C)
    spec = pl.BlockSpec((1, HW, C), lambda n: (n, 0, 0))
    # One (HW, C) sample per grid step: a few hundred KiB at these feature sizes.
    # TODO(synk): tile HW/C with a running sum/sumsq for very large images.
    if residual is None:
        kernel = functools.partial(instnorm_kernel, eps=eps, relu=relu)
        in_specs, args = [spec], (x3,)
    else:
        kernel = functools.partial(instnorm_residual_kernel, eps=eps)
        in_specs, args = [spec, spec], (x3, residual.reshape(N, HW, C))
    out = pl.pallas_call(
        kernel,
        out_shape=jax.ShapeDtypeStruct((N, HW, C), jnp.float32),
        grid_spec=pltpu.PrefetchScalarGridSpec(
            num_scalar_prefetch=0,
            grid=(N,),
            in_specs=in_specs,
            out_specs=spec,
        ),
        compiler_params=pltpu.CompilerParams(dimension_semantics=("parallel",)),
    )(*args)
    return out.reshape(N, H, W, C)


# ---------------------------------------------------------------------------
# Glue: padding + im2col (all convs here are stride 1); matmul itself is Pallas.
# Patches are materialized directly in bf16 (half the HBM bytes vs f32).
# TODO(synk): fold (kh, kw) patch formation into the kernel (index_map / manual
#             DMA) so patches are built in VMEM instead of HBM.
# ---------------------------------------------------------------------------
def im2col(xp, k):
    """xp: (N, Hp, Wp, C) -> ((N*OH*OW, k*k*C), OH, OW); patch order = (kh, kw, c)."""
    N, Hp, Wp, C = xp.shape
    OH, OW = Hp - k + 1, Wp - k + 1
    cols = [xp[:, kh:kh + OH, kw:kw + OW, :] for kh in range(k) for kw in range(k)]
    patches = jnp.stack(cols, axis=3)                  # (N, OH, OW, k*k, C)
    return patches.reshape(N * OH * OW, k * k * C), OH, OW


def conv2d_pallas(x, w, b, *, pad=0, pad_mode="reflect", act=None):
    """x: (N,H,W,Cin) NHWC f32; w: (Cout,Cin,k,k) torch layout; b: (Cout,)."""
    Cout, Cin, k, _ = w.shape
    N = x.shape[0]
    if pad > 0:
        mode = "reflect" if pad_mode == "reflect" else "constant"
        x = jnp.pad(x, ((0, 0), (pad, pad), (pad, pad), (0, 0)), mode=mode)
    patches, OH, OW = im2col(x.astype(jnp.bfloat16), k)
    # (Cout,Cin,kh,kw) -> (kh,kw,Cin,Cout) matches the (kh, kw, c) patch order.
    w_mat = jnp.transpose(w, (2, 3, 1, 0)).reshape(k * k * Cin, Cout).astype(jnp.bfloat16)
    out = pallas_matmul_bias_act(patches, w_mat, b, act=act)
    return out.reshape(N, OH, OW, Cout)


# ---------------------------------------------------------------------------
# TransferLearningGenerator forward
# ---------------------------------------------------------------------------
def transfer_learning_generator_forward(params, x_nchw, mask_nchw, *, n_blocks=2):
    # torch.cat((x, mask), 1), then NCHW -> NHWC (channels-last = TPU lane dim).
    h = jnp.concatenate([x_nchw, mask_nchw], axis=1)
    h = jnp.transpose(h, (0, 2, 3, 1)).astype(jnp.float32)

    # --- stand-in for pretrained_generator.model: CycleGAN-style 64-ch trunk ---
    # TODO(synk): the reference injects an arbitrary pretrained generator at
    #             construction time; a representative c7s1-64 + ResnetBlock trunk
    #             producing 64-channel features is reproduced here.
    h = conv2d_pallas(h, params["w_in"], params["b_in"], pad=3, pad_mode="reflect")
    h = pallas_instnorm(h, relu=True)
    for i in range(n_blocks):
        res = h
        y = conv2d_pallas(h, params[f"w_b{i}_1"], params[f"b_b{i}_1"],
                          pad=1, pad_mode="reflect")
        y = pallas_instnorm(y, relu=True)
        y = conv2d_pallas(y, params[f"w_b{i}_2"], params[f"b_b{i}_2"],
                          pad=1, pad_mode="reflect")
        h = pallas_instnorm(y, residual=res)           # out = x + conv_block(x)

    # --- new_task_layer: Conv2d(64, new_output_nc, 7) valid + tanh (fused) ---
    out = conv2d_pallas(h, params["w_task"], params["b_task"], pad=0, act="tanh")
    return jnp.transpose(out, (0, 3, 1, 2))            # back to NCHW like PyTorch


def init_params(key, input_nc, new_output_nc, n_blocks=2, ngf=64):
    def conv_init(k, cout, cin, ksz):
        kw_, kb_ = jax.random.split(k)
        w = 0.05 * jax.random.normal(kw_, (cout, cin, ksz, ksz), jnp.float32)
        b = 0.05 * jax.random.normal(kb_, (cout,), jnp.float32)
        return w, b

    keys = jax.random.split(key, 2 + 2 * n_blocks)
    params = {}
    params["w_in"], params["b_in"] = conv_init(keys[0], ngf, input_nc, 7)
    for i in range(n_blocks):
        params[f"w_b{i}_1"], params[f"b_b{i}_1"] = conv_init(keys[1 + 2 * i], ngf, ngf, 3)
        params[f"w_b{i}_2"], params[f"b_b{i}_2"] = conv_init(keys[2 + 2 * i], ngf, ngf, 3)
    params["w_task"], params["b_task"] = conv_init(keys[1 + 2 * n_blocks],
                                                   new_output_nc, ngf, 7)
    return params


if __name__ == "__main__":
    key = jax.random.PRNGKey(0)
    kx, km, kp = jax.random.split(key, 3)
    x = jax.random.normal(kx, (2, 3, 16, 16), jnp.float32)       # NCHW like PyTorch
    mask = jax.random.normal(km, (2, 1, 16, 16), jnp.float32)
    params = init_params(kp, input_nc=4, new_output_nc=3, n_blocks=2)

    out = transfer_learning_generator_forward(params, x, mask, n_blocks=2)
    out = jax.block_until_ready(out)
    # 7x7 valid conv: 16 -> 10 spatial; new_output_nc = 3
    assert out.shape == (2, 3, 10, 10), out.shape
    print("KERNEL_OK")
</pallas_src>

<mosaic_0001>
module attributes {stable_mosaic.version = 11 : i64} {
  func.func @matmul_bias_act_kernel(%arg0: i32, %arg1: memref<256x196xbf16, #tpu.memory_space<vmem>>, %arg2: memref<196x64xbf16, #tpu.memory_space<vmem>>, %arg3: memref<1x64xf32, #tpu.memory_space<vmem>>, %arg4: memref<256x64xf32, #tpu.memory_space<vmem>>) attributes {dimension_semantics = [#tpu.dimension_semantics<parallel>], iteration_bounds = array<i64: 2>, scalar_prefetch = 0 : i64, scratch_operands = 0 : i64, tpu.core_type = #tpu.core_type<tc>, window_params = [{transform_indices = @transform_0, window_bounds = array<i64: 256, 196>}, {pipeline_mode = #tpu.pipeline_mode<synchronous>, transform_indices = @transform_1, window_bounds = array<i64: 196, 64>}, {pipeline_mode = #tpu.pipeline_mode<synchronous>, transform_indices = @transform_2, window_bounds = array<i64: 1, 64>}, {transform_indices = @transform_3, window_bounds = array<i64: 256, 64>}]} {
    %c0 = arith.constant 0 : index
    %c0_0 = arith.constant 0 : index
    %0 = vector.load %arg1[%c0, %c0_0] : memref<256x196xbf16, #tpu.memory_space<vmem>>, vector<256x196xbf16>
    %c0_1 = arith.constant 0 : index
    %c0_2 = arith.constant 0 : index
    %1 = vector.load %arg2[%c0_1, %c0_2] : memref<196x64xbf16, #tpu.memory_space<vmem>>, vector<196x64xbf16>
    %cst = arith.constant dense<0.000000e+00> : vector<256x64xf32>
    %2 = tpu.matmul %0, %1, %cst {dimension_numbers = #tpu.dot_dimension_numbers<[1], [0], [0], [1], [0, 0, 1, 1], [], []>} : vector<256x196xbf16>, vector<196x64xbf16>, vector<256x64xf32> -> vector<256x64xf32>
    %c0_3 = arith.constant 0 : index
    %c0_4 = arith.constant 0 : index
    %3 = vector.load %arg3[%c0_3, %c0_4] : memref<1x64xf32, #tpu.memory_space<vmem>>, vector<1x64xf32>
    %4 = vector.broadcast %3 : vector<1x64xf32> to vector<256x64xf32>
    %5 = arith.addf %2, %4 : vector<256x64xf32>
    %c0_5 = arith.constant 0 : index
    %c0_6 = arith.constant 0 : index
    %6 = vector.load %arg4[%c0_5, %c0_6] : memref<256x64xf32, #tpu.memory_space<vmem>>, vector<256x64xf32>
    tpu.vector_store %arg4[%c0_5, %c0_6], %5 {strides = array<i32>} : memref<256x64xf32, #tpu.memory_space<vmem>>, vector<256x64xf32>,
    return
  }
  func.func @transform_0(%arg0: i32) -> (i32, i32) {
    %c0_i32 = arith.constant 0 : i32
    %c0_i32_0 = arith.constant 0 : i32
    return %arg0, %c0_i32 : i32, i32
  }
  func.func @transform_1(%arg0: i32) -> (i32, i32) {
    %c0_i32 = arith.constant 0 : i32
    %c0_i32_0 = arith.constant 0 : i32
    %c0_i32_1 = arith.constant 0 : i32
    return %c0_i32, %c0_i32_0 : i32, i32
  }
  func.func @transform_2(%arg0: i32) -> (i32, i32) {
    %c0_i32 = arith.constant 0 : i32
    %c0_i32_0 = arith.constant 0 : i32
    %c0_i32_1 = arith.constant 0 : i32
    return %c0_i32, %c0_i32_0 : i32, i32
  }
  func.func @transform_3(%arg0: i32) -> (i32, i32) {
    %c0_i32 = arith.constant 0 : i32
    %c0_i32_0 = arith.constant 0 : i32
    return %arg0, %c0_i32 : i32, i32
  }
}

</mosaic_0001>

<llo_original>
// kernel: tpu_custom_call.1
$region0: #{tpu_custom_call.1}
  #allocation0 [shape = 'u32[]', space=smem, size = 0x4, offset = 0x4, fixed_abs, tag = 'smem constant byte address 0x4 - core index']
  #allocation1 [shape = 'u32[144,128]{1,0:T(1,128)}', space=vmem, size = 0x12000, scoped, tag = 'internal scratch']
  %s0 = inlined_call_operand.vmem [shape: bf16[512,196], index: 0, kind: input, shape index: {}]
  %s1 = inlined_call_operand.vmem [shape: bf16[196,64], index: 1, kind: input, shape index: {}]
  %s2 = inlined_call_operand.vmem [shape: f32[1,64], index: 2, kind: input, shape index: {}]
  %s3 = inlined_call_operand.vmem [shape: f32[512,64], index: 3, kind: output, shape index: {}]
  %s4 = sld [smem:[#allocation0]]
  $region45: #{tpu_custom_call.1} parent=0
    _
  %s6 = ssub.s32 1, %s4
  %s7 = scalar_select 0, %s6, %s4
  loop: start=0, step=1, limit=4
  $region2: #{tpu_custom_call.1} parent=0 // loop_pre_header
    _
  $region3: #{tpu_custom_call.1} parent=0 // loop_header
    %s9 = sphi 0, %s13
    %p10 = scmp.ge.s32.totalorder %s9, 4
    %s19 = sphi 0, %s21
    %s22 = sphi 0, %s19
    %s23 = sphi 0, %s22
    %s39 = sphi 0, %s23
    %s43 = sphi 0, %s43
    %s45 = sphi 0, %s43
    %s46 = sphi 0, %s45
    %s60 = sphi 0, %s46
    %s64 = sphi 0, %s64
    %s66 = sphi 0, %s64
    %s67 = sphi 0, %s66
    %s81 = sphi 0, %s67
    %s87 = sphi 0, %s89
    %s90 = sphi 0, %s87
    %s91 = sphi 0, %s90
    %s107 = sphi 0, %s91
  $region4: #{tpu_custom_call.1} parent=0 // loop_header_branch
    %12 = sbr.rel (%p10) target = $region8
  $region5: #{tpu_custom_call.1} parent=0 // loop_body
    %s14 = ssub.s32 %s9, 1
    %s15 = ssub.s32 %s9, 2
    %s16 = sadd.s32 %s9, 1
    %s17 = ssub.s32 %s9, %s16
    %p18 = scmp.eq.s32.totalorder %s17, 0
    %s20 = sadd.s32 %s19, 1
    %s21 = scalar_select %p18, %s19, %s20
    %p24 = pneg %p18
    %p25 = scmp.eq.s32.totalorder %s9, 1
    %p26 = por %p24, %p25
    %p27 = scmp.ne.s32.totalorder %s19, %s22
    %p28 = scmp.eq.s32.totalorder %s9, 0
    %p29 = por %p27, %p28
    %p30 = scmp.ne.s32.totalorder %s19, %s22
    %p31 = scmp.eq.s32.totalorder %s14, 1
    %p32 = por %p30, %p31
    %p33 = scmp.ne.s32.totalorder %s22, %s23
    %p34 = scmp.eq.s32.totalorder %s14, 0
    %p35 = por %p33, %p34
    %p36 = scmp.ne.s32.totalorder %s22, %s23
    %p37 = scmp.eq.s32.totalorder %s15, 1
    %p38 = por %p36, %p37
    %p40 = scmp.ne.s32.totalorder %s23, %s39
    %p41 = scmp.eq.s32.totalorder %s15, 0
    %p42 = por %p40, %p41
    %s44 = sadd.s32 %s43, 1
    %p47 = scmp.eq.s32.totalorder %s9, 1
    %p48 = scmp.ne.s32.totalorder %s43, %s45
    %p49 = scmp.eq.s32.totalorder %s9, 0
    %p50 = por %p48, %p49
    %p51 = scmp.ne.s32.totalorder %s43, %s45
    %p52 = scmp.eq.s32.totalorder %s14, 1
    %p53 = por %p51, %p52
    %p54 = scmp.ne.s32.totalorder %s45, %s46
    %p55 = scmp.eq.s32.totalorder %s14, 0
    %p56 = por %p54, %p55
    %p57 = scmp.ne.s32.totalorder %s45, %s46
    %p58 = scmp.eq.s32.totalorder %s15, 1
    %p59 = por %p57, %p58
    %p61 = scmp.ne.s32.totalorder %s46, %s60
    %p62 = scmp.eq.s32.totalorder %s15, 0
    %p63 = por %p61, %p62
    %s65 = sadd.s32 %s64, 1
    %p68 = scmp.eq.s32.totalorder %s9, 1
    %p69 = scmp.ne.s32.totalorder %s64, %s66
    %p70 = scmp.eq.s32.totalorder %s9, 0
    %p71 = por %p69, %p70
    %p72 = scmp.ne.s32.totalorder %s64, %s66
    %p73 = scmp.eq.s32.totalorder %s14, 1
    %p74 = por %p72, %p73
    %p75 = scmp.ne.s32.totalorder %s66, %s67
    %p76 = scmp.eq.s32.totalorder %s14, 0
    %p77 = por %p75, %p76
    %p78 = scmp.ne.s32.totalorder %s66, %s67
    %p79 = scmp.eq.s32.totalorder %s15, 1
    %p80 = por %p78, %p79
    %p82 = scmp.ne.s32.totalorder %s67, %s81
    %p83 = scmp.eq.s32.totalorder %s15, 0
    %p84 = por %p82, %p83
    %s85 = ssub.s32 %s9, %s16
    %p86 = scmp.eq.s32.totalorder %s85, 0
    %s88 = sadd.s32 %s87, 1
    %s89 = scalar_select %p86, %s87, %s88
    %p92 = pneg %p86
    %p93 = scmp.eq.s32.totalorder %s9, 1
    %p94 = por %p92, %p93
    %p95 = scmp.ne.s32.totalorder %s87, %s90
    %p96 = scmp.eq.s32.totalorder %s9, 0
    %p97 = por %p95, %p96
    %p98 = scmp.ne.s32.totalorder %s87, %s90
    %p99 = scmp.eq.s32.totalorder %s14, 1
    %p100 = por %p98, %p99
    %p101 = scmp.ne.s32.totalorder %s90, %s91
    %p102 = scmp.eq.s32.totalorder %s14, 0
    %p103 = por %p101, %p102
    %p104 = scmp.ne.s32.totalorder %s90, %s91
    %p105 = scmp.eq.s32.totalorder %s15, 1
    %p106 = por %p104, %p105
    %p108 = scmp.ne.s32.totalorder %s91, %s107
    %p109 = scmp.eq.s32.totalorder %s15, 0
    %p110 = por %p108, %p109
    %p111 = scmp.le.s32.totalorder 1, %s9
    %p112 = scmp.lt.s32.totalorder %s9, 3
    %p113 = pnand %p111, %p112
    %p114 = pneg %p113
    // Predicated region
    $region9: #{tpu_custom_call.1} parent=5 // pred_check
      _
    $region10: #{tpu_custom_call.1} parent=5 // pred_check_branch
      %116 = sbr.rel (%p113) target = $region12
    $region11: #{tpu_custom_call.1} parent=5 // pred_region
      %s117 = ssub.s32 %s9, 1
      // Predicated region
      $region13: #{tpu_custom_call.1} parent=11 // pred_check
        %p118 = pneg %p56
      $region14: #{tpu_custom_call.1} parent=11 // pred_check_branch
        %120 = sbr.rel (%p118) target = $region16
      $region15: #{tpu_custom_call.1} parent=11 // pred_region
        _
      $region16: #{tpu_custom_call.1} parent=11 // pred_fallthru
        _
      // Predicated region
      $region17: #{tpu_custom_call.1} parent=11 // pred_check
        %p121 = pneg %p77
      $region18: #{tpu_custom_call.1} parent=11 // pred_check_branch
        %123 = sbr.rel (%p121) target = $region20
      $region19: #{tpu_custom_call.1} parent=11 // pred_region
        _
      $region20: #{tpu_custom_call.1} parent=11 // pred_fallthru
        _
    $region12: #{tpu_custom_call.1} parent=5 // pred_fallthru
      _
    %p124 = scmp.lt.s32.totalorder %s9, 2
    // Predicated region
    $region21: #{tpu_custom_call.1} parent=5 // pred_check
      %p125 = pneg %p124
    $region22: #{tpu_custom_call.1} parent=5 // pred_check_branch
      %127 = sbr.rel (%p125) target = $region24
    $region23: #{tpu_custom_call.1} parent=5 // pred_region
      // Predicated region
      $region25: #{tpu_custom_call.1} parent=23 // pred_check
        %p128 = pneg %p29
      $region26: #{tpu_custom_call.1} parent=23 // pred_check_branch
        %130 = sbr.rel (%p128) target = $region28
      $region27: #{tpu_custom_call.1} parent=23 // pred_region
        %s131 = smul.u32 32, %s9
        %p132 = scmp.lt.s32.totalorder %s131, 63
        %s133 = scalar_select %p132, %s131, 63
        %s134 = smul.addr %s133, 2
        %s135 = smul.addr %s134, 4
        %s136 = scalar_lea.vmem %s0, %s135
        %s137 = smul.u32 32, %s9
      $region28: #{tpu_custom_call.1} parent=23 // pred_fallthru
        _
    $region24: #{tpu_custom_call.1} parent=5 // pred_fallthru
      _
    %p138 = scmp.le.s32.totalorder 1, %s9
    %p139 = scmp.lt.s32.totalorder %s9, 3
    %p140 = pnand %p138, %p139
    %p141 = pneg %p140
    // Predicated region
    $region29: #{tpu_custom_call.1} parent=5 // pred_check
      _
    $region30: #{tpu_custom_call.1} parent=5 // pred_check_branch
      %143 = sbr.rel (%p140) target = $region32
    $region31: #{tpu_custom_call.1} parent=5 // pred_region
      %s144 = ssub.s32 %s9, 1
      %s145 = smul.u32 32, %s14
      %p146 = scmp.lt.s32.totalorder %s145, 63
      %s147 = scalar_select %p146, %s145, 63
      %s148 = smul.addr %s147, 2
      %s149 = smul.addr %s148, 4
      %s150 = scalar_lea.vmem %s0, %s149
      %p151 = pneg %p35
      %p152 = pneg %p32
      %p153 = pneg %p56
      %p154 = pneg %p53
      %p155 = pneg %p77
      %p156 = pneg %p74
      %p157 = pneg %p103
      %p158 = pneg %p100
      %s159 = smul.u32 32, %s14
      %p160 = scmp.lt.s32.totalorder %s159, 63
      %s161 = scalar_select %p160, %s159, 63
      %s162 = smul.addr %s161, 8
      %s163 = scalar_lea.vmem %s3, %s162
      %s164 = smul.u32 32, %s14
      %p165 = scmp.lt.s32.totalorder %s164, 63
      %s166 = scalar_select %p165, %s164, 63
      %s167 = smul.addr %s166, 2
      %s168 = smul.addr %s167, 4
      %s169 = scalar_lea.vmem %s0, %s168
      %s170 = smul.u32 32, %s14
      %s171 = smul.u32 32, %s14
      %p172 = scmp.lt.s32.totalorder %s171, 63
      %s173 = scalar_select %p172, %s171, 63
      %s174 = smul.addr %s173, 8
      %s175 = scalar_lea.vmem %s3, %s174
      %s176 = smul.u32 32, %s14
      %v178 = vld [vmem:[%s169] sm:$0xff]
      %v179 = vld [vmem:[%s169 + $0x8] sm:$0xff]
      %v180 = vld [vmem:[%s169 + $0x10] sm:$0xff]
      %v181 = vld [vmem:[%s169 + $0x18] sm:$0xff]
      %v182 = vld [vmem:[%s169 + $0x20] sm:$0xff]
      %v183 = vld [vmem:[%s169 + $0x28] sm:$0xff]
      %v184 = vld [vmem:[%s169 + $0x30] sm:$0xff]
      %v185 = vld [vmem:[%s169 + $0x38] sm:$0xff]
      %v186 = vld [vmem:[%s169 + $0x40] sm:$0xff]
      %v187 = vld [vmem:[%s169 + $0x48] sm:$0xff]
      %v188 = vld [vmem:[%s169 + $0x50] sm:$0xff]
      %v189 = vld [vmem:[%s169 + $0x58] sm:$0xff]
      %v190 = vld [vmem:[%s169 + $0x60] sm:$0xff]
      %v191 = vld [vmem:[%s169 + $0x68] sm:$0xff]
      %v192 = vld [vmem:[%s169 + $0x70] sm:$0xff]
      %v193 = vld [vmem:[%s169 + $0x78] sm:$0xff]
      %v194 = vld [vmem:[%s169 + $0x80] sm:$0xff]
      %v195 = vld [vmem:[%s169 + $0x88] sm:$0xff]
      %v196 = vld [vmem:[%s169 + $0x90] sm:$0xff]
      %v197 = vld [vmem:[%s169 + $0x98] sm:$0xff]
      %v198 = vld [vmem:[%s169 + $0xa0] sm:$0xff]
      %v199 = vld [vmem:[%s169 + $0xa8] sm:$0xff]
      %v200 = vld [vmem:[%s169 + $0xb0] sm:$0xff]
      %v201 = vld [vmem:[%s169 + $0xb8] sm:$0xff]
      %v202 = vld [vmem:[%s169 + $0xc0] sm:$0xff]
      %v203 = vld [vmem:[%s169 + $0xc8] sm:$0xff]
      %v204 = vld [vmem:[%s169 + $0xd0] sm:$0xff]
      %v205 = vld [vmem:[%s169 + $0xd8] sm:$0xff]
      %v206 = vld [vmem:[%s169 + $0xe0] sm:$0xff]
      %v207 = vld [vmem:[%s169 + $0xe8] sm:$0xff]
      %v208 = vld [vmem:[%s169 + $0xf0] sm:$0xff]
      %v209 = vld [vmem:[%s169 + $0xf8] sm:$0xff]
      %v210 = vld [vmem:[%s1] sm:$0xf]
      %v211 = vld [vmem:[%s1 + $0x4] sm:$0xf]
      %v212 = vld [vmem:[%s1 + $0x8] sm:$0xf]
      %v213 = vld [vmem:[%s1 + $0xc] sm:$0xf]
      %v214 = vld [vmem:[%s1 + $0x10] sm:$0xf]
      %v215 = vld [vmem:[%s1 + $0x14] sm:$0xf]
      %v216 = vld [vmem:[%s1 + $0x18] sm:$0xf]
      %v217 = vld [vmem:[%s1 + $0x1c] sm:$0xf]
      %v218 = vld [vmem:[%s1 + $0x20] sm:$0xf]
      %v219 = vld [vmem:[%s1 + $0x24] sm:$0xf]
      %v220 = vld [vmem:[%s1 + $0x28] sm:$0xf]
      %v221 = vld [vmem:[%s1 + $0x2c] sm:$0xf]
      %v222 = vld [vmem:[%s1 + $0x30] sm:$0xf]
      %v223 = vld [vmem:[%s1 + $0x34] sm:$0xf]
      %v224 = vld [vmem:[%s1 + $0x38] sm:$0xf]
      %v225 = vld [vmem:[%s1 + $0x3c] sm:$0xf]
      %v226 = vld [vmem:[%s1 + $0x40] sm:$0xf]
      %v227 = vld [vmem:[%s1 + $0x44] sm:$0xf]
      %v228 = vld [vmem:[%s1 + $0x48] sm:$0xf]
      %v229 = vld [vmem:[%s1 + $0x4c] sm:$0xf]
      %v230 = vld [vmem:[%s1 + $0x50] sm:$0xf]
      %v231 = vld [vmem:[%s1 + $0x54] sm:$0xf]
      %v232 = vld [vmem:[%s1 + $0x58] sm:$0xf]
      %v233 = vld [vmem:[%s1 + $0x5c] sm:$0xf]
      %v234 = vld [vmem:[%s1 + $0x60] sm:$0x3]
      %v235 = vld [vmem:[%s2] sm:$0x1]
      %v237 = vlaneseq
      %v238 = vshrl.u32 %v237, 7
      %v239 = vsub.s32 0, %v238
      %v240 = vrot.slane %v235, %v239
      %v274 = vunpack.c.l.b16 %v178
      %v275 = vunpack.c.h.b16 %v178
      %v276 = vunpack.c.l.b16 %v179
      %v277 = vunpack.c.h.b16 %v179
      %v278 = vunpack.c.l.b16 %v180
      %v279 = vunpack.c.h.b16 %v180
      %v280 = vunpack.c.l.b16 %v181
      %v281 = vunpack.c.h.b16 %v181
      %v282 = vunpack.c.l.b16 %v182
      %v283 = vunpack.c.h.b16 %v182
      %v284 = vunpack.c.l.b16 %v183
      %v285 = vunpack.c.h.b16 %v183
      %v286 = vunpack.c.l.b16 %v184
      %v287 = vunpack.c.h.b16 %v184
      %v288 = vunpack.c.l.b16 %v185
      %v289 = vunpack.c.h.b16 %v185
      %v290 = vunpack.c.l.b16 %v186
      %v291 = vunpack.c.h.b16 %v186
      %v292 = vunpack.c.l.b16 %v187
      %v293 = vunpack.c.h.b16 %v187
      %v294 = vunpack.c.l.b16 %v188
      %v295 = vunpack.c.h.b16 %v188
      %v296 = vunpack.c.l.b16 %v189
      %v297 = vunpack.c.h.b16 %v189
      %v298 = vunpack.c.l.b16 %v190
      %v299 = vunpack.c.h.b16 %v190
      %v300 = vunpack.c.l.b16 %v191
      %v301 = vunpack.c.h.b16 %v191
      %v302 = vunpack.c.l.b16 %v192
      %v303 = vunpack.c.h.b16 %v192
      %v304 = vunpack.c.l.b16 %v193
      %v305 = vunpack.c.h.b16 %v193
      %v306 = vunpack.c.l.b16 %v194
      %v307 = vunpack.c.h.b16 %v194
      %v308 = vunpack.c.l.b16 %v195
      %v309 = vunpack.c.h.b16 %v195
      %v310 = vunpack.c.l.b16 %v196
      %v311 = vunpack.c.h.b16 %v196
      %v312 = vunpack.c.l.b16 %v197
      %v313 = vunpack.c.h.b16 %v197
      %v314 = vunpack.c.l.b16 %v198
      %v315 = vunpack.c.h.b16 %v198
      %v316 = vunpack.c.l.b16 %v199
      %v317 = vunpack.c.h.b16 %v199
      %v318 = vunpack.c.l.b16 %v200
      %v319 = vunpack.c.h.b16 %v200
      %v320 = vunpack.c.l.b16 %v201
      %v321 = vunpack.c.h.b16 %v201
      %v322 = vunpack.c.l.b16 %v202
      %v323 = vunpack.c.h.b16 %v202
      %v324 = vunpack.c.l.b16 %v203
      %v325 = vunpack.c.h.b16 %v203
      %v326 = vunpack.c.l.b16 %v204
      %v327 = vunpack.c.h.b16 %v204
      %v328 = vunpack.c.l.b16 %v205
      %v329 = vunpack.c.h.b16 %v205
      %v330 = vunpack.c.l.b16 %v206
      %v331 = vunpack.c.h.b16 %v206
      %v332 = vunpack.c.l.b16 %v207
      %v333 = vunpack.c.h.b16 %v207
      %v334 = vunpack.c.l.b16 %v208
      %v335 = vunpack.c.h.b16 %v208
      %v336 = vunpack.c.l.b16 %v209
      %v337 = vunpack.c.h.b16 %v209
      %v338 = vpack.c.b16 %v276, %v274
      %v339 = vpack.c.b16 %v277, %v275
      %v340 = vpack.c.b16 %v280, %v278
      %v341 = vpack.c.b16 %v281, %v279
      %v342 = vpack.c.b16 %v284, %v282
      %v343 = vpack.c.b16 %v285, %v283
      %v344 = vpack.c.b16 %v288, %v286
      %v345 = vpack.c.b16 %v289, %v287
      %v346 = vpack.c.b16 %v292, %v290
      %v347 = vpack.c.b16 %v293, %v291
      %v348 = vpack.c.b16 %v296, %v294
      %v349 = vpack.c.b16 %v297, %v295
      %v350 = vpack.c.b16 %v300, %v298
      %v351 = vpack.c.b16 %v301, %v299
      %v352 = vpack.c.b16 %v304, %v302
      %v353 = vpack.c.b16 %v305, %v303
      %v354 = vpack.c.b16 %v308, %v306
      %v355 = vpack.c.b16 %v309, %v307
      %v356 = vpack.c.b16 %v312, %v310
      %v357 = vpack.c.b16 %v313, %v311
      %v358 = vpack.c.b16 %v316, %v314
      %v359 = vpack.c.b16 %v317, %v315
      %v360 = vpack.c.b16 %v320, %v318
      %v361 = vpack.c.b16 %v321, %v319
      %v362 = vpack.c.b16 %v324, %v322
      %v363 = vpack.c.b16 %v325, %v323
      %v364 = vpack.c.b16 %v328, %v326
      %v365 = vpack.c.b16 %v329, %v327
      %v366 = vpack.c.b16 %v332, %v330
      %v367 = vpack.c.b16 %v333, %v331
      %v368 = vpack.c.b16 %v336, %v334
      %v369 = vpack.c.b16 %v337, %v335
      %v411 = vunpack.c.l.b16 %v210
      %v412 = vunpack.c.l.b16 %v211
      %v413 = vunpack.c.l.b16 %v212
      %v414 = vunpack.c.l.b16 %v213
      %v415 = vunpack.c.l.b16 %v214
      %v416 = vunpack.c.l.b16 %v215
      %v417 = vunpack.c.l.b16 %v216
      %v418 = vunpack.c.l.b16 %v217
      %v419 = vunpack.c.l.b16 %v218
      %v420 = vunpack.c.l.b16 %v219
      %v421 = vunpack.c.l.b16 %v220
      %v422 = vunpack.c.l.b16 %v221
      %v423 = vunpack.c.l.b16 %v222
      %v424 = vunpack.c.l.b16 %v223
      %v425 = vunpack.c.l.b16 %v224
      %v426 = vunpack.c.l.b16 %v225
      %v427 = vunpack.c.l.b16 %v226
      %v428 = vunpack.c.l.b16 %v227
      %v429 = vunpack.c.l.b16 %v228
      %v430 = vunpack.c.l.b16 %v229
      %v431 = vunpack.c.l.b16 %v230
      %v432 = vunpack.c.l.b16 %v231
      %v433 = vunpack.c.l.b16 %v232
      %v434 = vunpack.c.l.b16 %v233
      %v435 = vunpack.c.l.b16 %v234
      %v436 = vpack.c.b16 %v412, %v411
      %v437 = vpack.c.b16 %v414, %v413
      %v438 = vpack.c.b16 %v416, %v415
      %v439 = vpack.c.b16 %v418, %v417
      %v440 = vpack.c.b16 %v420, %v419
      %v441 = vpack.c.b16 %v422, %v421
      %v442 = vpack.c.b16 %v424, %v423
      %v443 = vpack.c.b16 %v426, %v425
      %v444 = vpack.c.b16 %v428, %v427
      %v445 = vpack.c.b16 %v430, %v429
      %v446 = vpack.c.b16 %v432, %v431
      %v447 = vpack.c.b16 %v434, %v433
      %v448 = vpack.c.b16 %v435, %v435
      %vm461 = vcmask 556032
      %v463 = vsel %vm461, %v339, 0
      %v466 = vsel %vm461, %v341, 0
      %v469 = vsel %vm461, %v343, 0
      %v472 = vsel %vm461, %v345, 0
      %v475 = vsel %vm461, %v347, 0
      %v478 = vsel %vm461, %v349, 0
      %v481 = vsel %vm461, %v351, 0
      %v484 = vsel %vm461, %v353, 0
      %v487 = vsel %vm461, %v355, 0
      %v490 = vsel %vm461, %v357, 0
      %v493 = vsel %vm461, %v359, 0
      %v496 = vsel %vm461, %v361, 0
      %v499 = vsel %vm461, %v363, 0
      %v502 = vsel %vm461, %v365, 0
      %v505 = vsel %vm461, %v367, 0
      %v508 = vsel %vm461, %v369, 0
      %vm510 = vcmask 1041408
      %v512 = vsel %vm510, %v448, 0
      %514 = vmatprep.subr.bf16.mxu0 0
      %515 = vmatpush1.bf16.msra.mxu0 %v436
      %516 = vmatprep.subr.bf16.mxu0 0
      %517 = vmatpush1.bf16.msra.mxu0 %v437
      %518 = vmatprep.subr.bf16.mxu0 0
      %519 = vmatpush1.bf16.msra.mxu0 %v438
      %520 = vmatprep.subr.bf16.mxu0 0
      %521 = vmatpush1.bf16.msra.mxu0 %v439
      %522 = vmatprep.subr.bf16.mxu0 0
      %523 = vmatpush1.bf16.msra.mxu0 %v440
      %524 = vmatprep.subr.bf16.mxu0 0
      %525 = vmatpush1.bf16.msra.mxu0 %v441
      %526 = vmatprep.subr.bf16.mxu0 0
      %527 = vmatpush1.bf16.msra.mxu0 %v442
      %528 = vmatprep.subr.bf16.mxu0 0
      %529 = vmatpush1.bf16.msra.mxu0 %v443
      %530 = vmatprep.subr.bf16.mxu0 0
      %531 = vmatpush1.bf16.msra.mxu0 %v444
      %532 = vmatprep.subr.bf16.mxu0 0
      %533 = vmatpush1.bf16.msra.mxu0 %v445
      %534 = vmatprep.subr.bf16.mxu0 0
      %535 = vmatpush1.bf16.msra.mxu0 %v446
      %536 = vmatprep.subr.bf16.mxu0 0
      %537 = vmatpush1.bf16.msra.mxu0 %v447
      %538 = vmatprep.subr.bf16.mxu0 0
      %539 = vmatpush1.bf16.msra.mxu0 %v512
      %540 = vmatprep.subr.bf16.mxu0 0
      %541 = vmatpush1.bf16.msra.mxu0 0
      %542 = vmatprep.subr.bf16.mxu0 0
      %543 = vmatpush1.bf16.msra.mxu0 0
      %544 = vmatprep.subr.bf16.mxu0 0
      %545 = vmatpush1.bf16.msra.mxu0 0
      %546 = vmatprep.mubr.bf16.mxu0 %v463
      %547 = vmatmul.mubr.bf16.gmra.mrb[0].mxu0 %v338
      %v548 = vpop.f32.mrb[0].mxu0
      %v549 = vadd.f32 %v240, %v548
      %v550 = vpop.f32.mrb[0].mxu0
      %v551 = vpop.f32.mrb[0].mxu0
      %v552 = vadd.f32 %v240, %v551
      %v553 = vpop.f32.mrb[0].mxu0
      %554 = vmatprep.mubr.bf16.mxu0 %v466
      %555 = vmatmul.mubr.bf16.gmra.mrb[0].mxu0 %v340
      %v556 = vpop.f32.mrb[0].mxu0
      %v557 = vadd.f32 %v240, %v556
      %v558 = vpop.f32.mrb[0].mxu0
      %v559 = vpop.f32.mrb[0].mxu0
      %v560 = vadd.f32 %v240, %v559
      %v561 = vpop.f32.mrb[0].mxu0
      %562 = vmatprep.mubr.bf16.mxu0 %v469
      %563 = vmatmul.mubr.bf16.gmra.mrb[0].mxu0 %v342
      %v564 = vpop.f32.mrb[0].mxu0
      %v565 = vadd.f32 %v240, %v564
      %v566 = vpop.f32.mrb[0].mxu0
      %v567 = vpop.f32.mrb[0].mxu0
      %v568 = vadd.f32 %v240, %v567
      %v569 = vpop.f32.mrb[0].mxu0
      %570 = vmatprep.mubr.bf16.mxu0 %v472
      %571 = vmatmul.mubr.bf16.gmra.mrb[0].mxu0 %v344
      %v572 = vpop.f32.mrb[0].mxu0
      %v573 = vadd.f32 %v240, %v572
      %v574 = vpop.f32.mrb[0].mxu0
      %v575 = vpop.f32.mrb[0].mxu0
      %v576 = vadd.f32 %v240, %v575
      %v577 = vpop.f32.mrb[0].mxu0
      %578 = vmatprep.mubr.bf16.mxu0 %v475
      %579 = vmatmul.mubr.bf16.gmra.mrb[0].mxu0 %v346
      %v580 = vpop.f32.mrb[0].mxu0
      %v581 = vadd.f32 %v240, %v580
      %v582 = vpop.f32.mrb[0].mxu0
      %v583 = vpop.f32.mrb[0].mxu0
      %v584 = vadd.f32 %v240, %v583
      %v585 = vpop.f32.mrb[0].mxu0
      %586 = vmatprep.mubr.bf16.mxu0 %v478
      %587 = vmatmul.mubr.bf16.gmra.mrb[0].mxu0 %v348
      %v588 = vpop.f32.mrb[0].mxu0
      %v589 = vadd.f32 %v240, %v588
      %v590 = vpop.f32.mrb[0].mxu0
      %v591 = vpop.f32.mrb[0].mxu0
      %v592 = vadd.f32 %v240, %v591
      %v593 = vpop.f32.mrb[0].mxu0
      %594 = vmatprep.mubr.bf16.mxu0 %v481
      %595 = vmatmul.mubr.bf16.gmra.mrb[0].mxu0 %v350
      %v596 = vpop.f32.mrb[0].mxu0
      %v597 = vadd.f32 %v240, %v596
      %v598 = vpop.f32.mrb[0].mxu0
      %v599 = vpop.f32.mrb[0].mxu0
      %v600 = vadd.f32 %v240, %v599
      %v601 = vpop.f32.mrb[0].mxu0
      %602 = vmatprep.mubr.bf16.mxu0 %v484
      %603 = vmatmul.mubr.bf16.gmra.mrb[0].mxu0 %v352
      %v604 = vpop.f32.mrb[0].mxu0
      %v605 = vadd.f32 %v240, %v604
      %v606 = vpop.f32.mrb[0].mxu0
      %v607 = vpop.f32.mrb[0].mxu0
      %v608 = vadd.f32 %v240, %v607
      %v609 = vpop.f32.mrb[0].mxu0
      %610 = vmatprep.mubr.bf16.mxu0 %v487
      %611 = vmatmul.mubr.bf16.gmra.mrb[0].mxu0 %v354
      %v612 = vpop.f32.mrb[0].mxu0
      %v613 = vadd.f32 %v240, %v612
      %v614 = vpop.f32.mrb[0].mxu0
      %v615 = vpop.f32.mrb[0].mxu0
      %v616 = vadd.f32 %v240, %v615
      %v617 = vpop.f32.mrb[0].mxu0
      %618 = vmatprep.mubr.bf16.mxu0 %v490
      %619 = vmatmul.mubr.bf16.gmra.mrb[0].mxu0 %v356
      %v620 = vpop.f32.mrb[0].mxu0
      %v621 = vadd.f32 %v240, %v620
      %v622 = vpop.f32.mrb[0].mxu0
      %v623 = vpop.f32.mrb[0].mxu0
      %v624 = vadd.f32 %v240, %v623
      %v625 = vpop.f32.mrb[0].mxu0
      %626 = vmatprep.mubr.bf16.mxu0 %v493
      %627 = vmatmul.mubr.bf16.gmra.mrb[0].mxu0 %v358
      %v628 = vpop.f32.mrb[0].mxu0
      %v629 = vadd.f32 %v240, %v628
      %v630 = vpop.f32.mrb[0].mxu0
      %v631 = vpop.f32.mrb[0].mxu0
      %v632 = vadd.f32 %v240, %v631
      %v633 = vpop.f32.mrb[0].mxu0
      %634 = vmatprep.mubr.bf16.mxu0 %v496
      %635 = vmatmul.mubr.bf16.gmra.mrb[0].mxu0 %v360
      %v636 = vpop.f32.mrb[0].mxu0
      %v637 = vadd.f32 %v240, %v636
      %v638 = vpop.f32.mrb[0].mxu0
      %v639 = vpop.f32.mrb[0].mxu0
      %v640 = vadd.f32 %v240, %v639
      %v641 = vpop.f32.mrb[0].mxu0
      %642 = vmatprep.mubr.bf16.mxu0 %v499
      %643 = vmatmul.mubr.bf16.gmra.mrb[0].mxu0 %v362
      %v644 = vpop.f32.mrb[0].mxu0
      %v645 = vadd.f32 %v240, %v644
      %v646 = vpop.f32.mrb[0].mxu0
      %v647 = vpop.f32.mrb[0].mxu0
      %v648 = vadd.f32 %v240, %v647
      %v649 = vpop.f32.mrb[0].mxu0
      %650 = vmatprep.mubr.bf16.mxu0 %v502
      %651 = vmatmul.mubr.bf16.gmra.mrb[0].mxu0 %v364
      %v652 = vpop.f32.mrb[0].mxu0
      %v653 = vadd.f32 %v240, %v652
      %v654 = vpop.f32.mrb[0].mxu0
      %v655 = vpop.f32.mrb[0].mxu0
      %v656 = vadd.f32 %v240, %v655
      %v657 = vpop.f32.mrb[0].mxu0
      %658 = vmatprep.mubr.bf16.mxu0 %v505
      %659 = vmatmul.mubr.bf16.gmra.mrb[0].mxu0 %v366
      %v660 = vpop.f32.mrb[0].mxu0
      %v661 = vadd.f32 %v240, %v660
      %v662 = vpop.f32.mrb[0].mxu0
      %v663 = vpop.f32.mrb[0].mxu0
      %v664 = vadd.f32 %v240, %v663
      %v665 = vpop.f32.mrb[0].mxu0
      %666 = vmatprep.mubr.bf16.mxu0 %v508
      %667 = vmatmul.mubr.bf16.gmra.mrb[0].mxu0 %v368
      %v668 = vpop.f32.mrb[0].mxu0
      %v669 = vadd.f32 %v240, %v668
      %v670 = vpop.f32.mrb[0].mxu0
      %v671 = vpop.f32.mrb[0].mxu0
      %v672 = vadd.f32 %v240, %v671
      %v673 = vpop.f32.mrb[0].mxu0
      %674 = vdwg.mxu0
      %vm675 = vcmask 523264
      %676 = vst.msk [vmem:[%s175] sm:$0xff] %vm675, %v549
      %677 = vst.msk [vmem:[%s175 + $0x8] sm:$0xff] %vm675, %v552
      %678 = vst.msk [vmem:[%s175 + $0x10] sm:$0xff] %vm675, %v557
      %679 = vst.msk [vmem:[%s175 + $0x18] sm:$0xff] %vm675, %v560
      %680 = vst.msk [vmem:[%s175 + $0x20] sm:$0xff] %vm675, %v565
      %681 = vst.msk [vmem:[%s175 + $0x28] sm:$0xff] %vm675, %v568
      %682 = vst.msk [vmem:[%s175 + $0x30] sm:$0xff] %vm675, %v573
      %683 = vst.msk [vmem:[%s175 + $0x38] sm:$0xff] %vm675, %v576
      %684 = vst.msk [vmem:[%s175 + $0x40] sm:$0xff] %vm675, %v581
      %685 = vst.msk [vmem:[%s175 + $0x48] sm:$0xff] %vm675, %v584
      %686 = vst.msk [vmem:[%s175 + $0x50] sm:$0xff] %vm675, %v589
      %687 = vst.msk [vmem:[%s175 + $0x58] sm:$0xff] %vm675, %v592
      %688 = vst.msk [vmem:[%s175 + $0x60] sm:$0xff] %vm675, %v597
      %689 = vst.msk [vmem:[%s175 + $0x68] sm:$0xff] %vm675, %v600
      %690 = vst.msk [vmem:[%s175 + $0x70] sm:$0xff] %vm675, %v605
      %691 = vst.msk [vmem:[%s175 + $0x78] sm:$0xff] %vm675, %v608
      %692 = vst.msk [vmem:[%s175 + $0x80] sm:$0xff] %vm675, %v613
      %693 = vst.msk [vmem:[%s175 + $0x88] sm:$0xff] %vm675, %v616
      %694 = vst.msk [vmem:[%s175 + $0x90] sm:$0xff] %vm675, %v621
      %695 = vst.msk [vmem:[%s175 + $0x98] sm:$0xff] %vm675, %v624
      %696 = vst.msk [vmem:[%s175 + $0xa0] sm:$0xff] %vm675, %v629
      %697 = vst.msk [vmem:[%s175 + $0xa8] sm:$0xff] %vm675, %v632
      %698 = vst.msk [vmem:[%s175 + $0xb0] sm:$0xff] %vm675, %v637
      %699 = vst.msk [vmem:[%s175 + $0xb8] sm:$0xff] %vm675, %v640
      %700 = vst.msk [vmem:[%s175 + $0xc0] sm:$0xff] %vm675, %v645
      %701 = vst.msk [vmem:[%s175 + $0xc8] sm:$0xff] %vm675, %v648
      %702 = vst.msk [vmem:[%s175 + $0xd0] sm:$0xff] %vm675, %v653
      %703 = vst.msk [vmem:[%s175 + $0xd8] sm:$0xff] %vm675, %v656
      %704 = vst.msk [vmem:[%s175 + $0xe0] sm:$0xff] %vm675, %v661
      %705 = vst.msk [vmem:[%s175 + $0xe8] sm:$0xff] %vm675, %v664
      %706 = vst.msk [vmem:[%s175 + $0xf0] sm:$0xff] %vm675, %v669
      %707 = vst.msk [vmem:[%s175 + $0xf8] sm:$0xff] %vm675, %v672
      %s708 = smul.u32 32, %s14
      %p709 = scmp.lt.s32.totalorder %s708, 63
      %s710 = scalar_select %p709, %s708, 63
      %s711 = smul.addr %s710, 8
      %s712 = scalar_lea.vmem %s3, %s711
      // Predicated region
      $region33: #{tpu_custom_call.1} parent=31 // pred_check
        %p713 = pneg %p100
      $region34: #{tpu_custom_call.1} parent=31 // pred_check_branch
        %715 = sbr.rel (%p713) target = $region36
      $region35: #{tpu_custom_call.1} parent=31 // pred_region
        %s716 = smul.u32 32, %s14
      $region36: #{tpu_custom_call.1} parent=31 // pred_fallthru
        _
    $region32: #{tpu_custom_call.1} parent=5 // pred_fallthru
      _
    %p717 = scmp.le.s32.totalorder 2, %s9
    // Predicated region
    $region37: #{tpu_custom_call.1} parent=5 // pred_check
      %p718 = pneg %p717
    $region38: #{tpu_custom_call.1} parent=5 // pred_check_branch
      %720 = sbr.rel (%p718) target = $region40
    $region39: #{tpu_custom_call.1} parent=5 // pred_region
      %s721 = ssub.s32 %s9, 2
      // Predicated region
      $region41: #{tpu_custom_call.1} parent=39 // pred_check
        %p722 = pneg %p106
      $region42: #{tpu_custom_call.1} parent=39 // pred_check_branch
        %724 = sbr.rel (%p722) target = $region44
      $region43: #{tpu_custom_call.1} parent=39 // pred_region
        %s725 = smul.u32 32, %s15
        %p726 = scmp.lt.s32.totalorder %s725, 63
        %s727 = scalar_select %p726, %s725, 63
        %s728 = smul.addr %s727, 8
        %s729 = scalar_lea.vmem %s3, %s728
      $region44: #{tpu_custom_call.1} parent=39 // pred_fallthru
        _
    $region40: #{tpu_custom_call.1} parent=5 // pred_fallthru
      _
  $region6: #{tpu_custom_call.1} parent=0 // loop_footer
    %s13 = sadd.s32 1, %s9
  $region7: #{tpu_custom_call.1} parent=0 // loop_footer_branch
    %8 = sbr.rel target = $region3
  $region8: #{tpu_custom_call.1} parent=0 // loop_exit
    _

</llo_original>
